<compile_context>
chip_gen: v5e
topology: v5e:2x2
jax: 0.10.0
libtpu: 0.0.40
codegen_flags: <defaults>
</compile_context>

<pallas_src>
import functools

import jax
import jax.numpy as jnp
from jax import lax
from jax.experimental import pallas as pl
from jax.experimental.pallas import tpu as pltpu


def _round_up(x, m):
    return (x + m - 1) // m * m


def fc_kernel(x_ref, w_ref, b_ref, o_ref):
    # x_ref: (tm, K)  f32   -- activations; cast to bf16 in-register
    # w_ref: (tn, K)  bf16  -- PyTorch (out, in) layout, lane-padded along N
    # b_ref: (1, tn)  f32   -- lane-padded bias
    # o_ref: (tm, tn) f32
    x_bf = x_ref[...].astype(jnp.bfloat16)
    acc = lax.dot_general(
        x_bf, w_ref[...],
        dimension_numbers=(((1,), (1,)), ((), ())),  # contract x's K against w's K
        preferred_element_type=jnp.float32)
    o_ref[...] = (acc + b_ref[...]).astype(o_ref.dtype)


def prepare_fc_params(w, b):
    """One-time parameter prep (done at init, not per call).

    w: (num_class, 2048) float32  ->  (num_class_pad, 2048) bfloat16, N padded to 128
    b: (num_class,)      float32  ->  (1, num_class_pad)    float32
    """
    N, K = w.shape
    n_pad = _round_up(N, 128)
    w_p = jnp.zeros((n_pad, K), jnp.bfloat16).at[:N, :].set(w.astype(jnp.bfloat16))
    b_p = jnp.zeros((1, n_pad), jnp.float32).at[0, :N].set(b.astype(jnp.float32))
    return w_p, b_p


@functools.partial(jax.jit, static_argnames=("num_class", "block_m", "block_n"))
def fc_forward(x, w_pad, b_pad, *, num_class, block_m=512, block_n=1024):
    """y = x @ w.T + b, matching torch.nn.Linear(2048, num_class).forward.

    x:     (B, 2048) float32
    w_pad: (num_class_pad, 2048) bfloat16 -- from prepare_fc_params
    b_pad: (1, num_class_pad)    float32  -- from prepare_fc_params
    """
    B, K = x.shape
    n_pad, K2 = w_pad.shape
    assert K == K2, (K, K2)
    assert n_pad % 128 == 0 and n_pad >= num_class

    # Batch tiling: tm >= 512 amortizes per-step pipeline overhead for large B;
    # small B uses one full-extent block (no padding games on the batch axis).
    tm = B if B <= block_m else block_m
    # Class tiling: keeps the resident weight tile bounded for vocab-sized heads;
    # a single tile (weight stays resident in VMEM) for typical classifier heads.
    tn = n_pad if n_pad <= block_n else block_n
    grid = (pl.cdiv(B, tm), pl.cdiv(n_pad, tn))

    y_pad = pl.pallas_call(
        fc_kernel,
        out_shape=jax.ShapeDtypeStruct((B, n_pad), x.dtype),
        grid=grid,
        in_specs=[
            pl.BlockSpec((tm, K), lambda i, j: (i, 0)),   # x: streamed over batch
            pl.BlockSpec((tn, K), lambda i, j: (j, 0)),   # w: constant over batch tiles
            pl.BlockSpec((1, tn), lambda i, j: (0, j)),   # bias
        ],
        out_specs=pl.BlockSpec((tm, tn), lambda i, j: (i, j)),
        compiler_params=pltpu.CompilerParams(
            # No reduction axis in the grid (K is whole) -> both axes parallel,
            # shards across the two TensorCores on v7x.
            dimension_semantics=("parallel", "parallel")),
    )(x, w_pad, b_pad)

    if n_pad == num_class:
        return y_pad
    return y_pad[:, :num_class]


if __name__ == "__main__":
    key = jax.random.PRNGKey(0)
    k_x, k_w, k_b = jax.random.split(key, 3)

    B = 8              # small batch
    IN = 2048          # fixed by the module: nn.Linear(2048, num_class)
    NUM_CLASS = 16     # small num_class

    # Deterministic init (mimics torch Linear's uniform(-1/sqrt(in), 1/sqrt(in)))
    bound = 1.0 / jnp.sqrt(jnp.float32(IN))
    x = jax.random.normal(k_x, (B, IN), dtype=jnp.float32)
    w = jax.random.uniform(k_w, (NUM_CLASS, IN), minval=-bound, maxval=bound,
                           dtype=jnp.float32)
    b = jax.random.uniform(k_b, (NUM_CLASS,), minval=-bound, maxval=bound,
                           dtype=jnp.float32)

    # One-time weight-stationary prep (bf16 + lane padding), NOT per call.
    w_pad, b_pad = prepare_fc_params(w, b)

    y = fc_forward(x, w_pad, b_pad, num_class=NUM_CLASS)
    jax.block_until_ready(y)
    assert y.shape == (B, NUM_CLASS)

    # Reference on the same bf16-quantized operands (f32 accumulation).
    y_ref = (x.astype(jnp.bfloat16).astype(jnp.float32)
             @ w.astype(jnp.bfloat16).astype(jnp.float32).T + b)
    assert jnp.allclose(y, y_ref, atol=1e-2, rtol=1e-2), \
        float(jnp.max(jnp.abs(y - y_ref)))

    # Sanity vs. the full-f32 Linear (bf16 inputs over K=2048 -> looser tolerance).
    y_f32 = x @ w.T + b
    assert jnp.allclose(y, y_f32, atol=5e-2, rtol=5e-2), \
        float(jnp.max(jnp.abs(y - y_f32)))

    print("KERNEL_OK")
</pallas_src>

<mosaic_0001>
module attributes {stable_mosaic.version = 11 : i64} {
  func.func @fc_kernel(%arg0: i32, %arg1: i32, %arg2: memref<8x2048xf32, #tpu.memory_space<vmem>>, %arg3: memref<128x2048xbf16, #tpu.memory_space<vmem>>, %arg4: memref<1x128xf32, #tpu.memory_space<vmem>>, %arg5: memref<8x128xf32, #tpu.memory_space<vmem>>) attributes {dimension_semantics = [#tpu.dimension_semantics<parallel>, #tpu.dimension_semantics<parallel>], iteration_bounds = array<i64: 1, 1>, scalar_prefetch = 0 : i64, scratch_operands = 0 : i64, tpu.core_type = #tpu.core_type<tc>, window_params = [{transform_indices = @transform_0, window_bounds = array<i64: 8, 2048>}, {transform_indices = @transform_1, window_bounds = array<i64: 128, 2048>}, {transform_indices = @transform_2, window_bounds = array<i64: 1, 128>}, {transform_indices = @transform_3, window_bounds = array<i64: 8, 128>}]} {
    %c0 = arith.constant 0 : index
    %c0_0 = arith.constant 0 : index
    %0 = vector.load %arg2[%c0, %c0_0] : memref<8x2048xf32, #tpu.memory_space<vmem>>, vector<8x2048xf32>
    %1 = arith.truncf %0 : vector<8x2048xf32> to vector<8x2048xbf16>
    %c0_1 = arith.constant 0 : index
    %c0_2 = arith.constant 0 : index
    %2 = vector.load %arg3[%c0_1, %c0_2] : memref<128x2048xbf16, #tpu.memory_space<vmem>>, vector<128x2048xbf16>
    %cst = arith.constant dense<0.000000e+00> : vector<8x128xf32>
    %3 = tpu.matmul %1, %2, %cst {dimension_numbers = #tpu.dot_dimension_numbers<[1], [1], [0], [0], [0, 0, 1, 0], [], []>} : vector<8x2048xbf16>, vector<128x2048xbf16>, vector<8x128xf32> -> vector<8x128xf32>
    %c0_3 = arith.constant 0 : index
    %c0_4 = arith.constant 0 : index
    %4 = vector.load %arg4[%c0_3, %c0_4] : memref<1x128xf32, #tpu.memory_space<vmem>>, vector<1x128xf32>
    %5 = vector.broadcast %4 : vector<1x128xf32> to vector<8x128xf32>
    %6 = arith.addf %3, %5 : vector<8x128xf32>
    %c0_5 = arith.constant 0 : index
    %c0_6 = arith.constant 0 : index
    %7 = vector.load %arg5[%c0_5, %c0_6] : memref<8x128xf32, #tpu.memory_space<vmem>>, vector<8x128xf32>
    tpu.vector_store %arg5[%c0_5, %c0_6], %6 {strides = array<i32>} : memref<8x128xf32, #tpu.memory_space<vmem>>, vector<8x128xf32>,
    return
  }
  func.func @transform_0(%arg0: i32, %arg1: i32) -> (i32, i32) {
    %c0_i32 = arith.constant 0 : i32
    %c0_i32_0 = arith.constant 0 : i32
    return %arg0, %c0_i32 : i32, i32
  }
  func.func @transform_1(%arg0: i32, %arg1: i32) -> (i32, i32) {
    %c0_i32 = arith.constant 0 : i32
    %c0_i32_0 = arith.constant 0 : i32
    return %arg1, %c0_i32 : i32, i32
  }
  func.func @transform_2(%arg0: i32, %arg1: i32) -> (i32, i32) {
    %c0_i32 = arith.constant 0 : i32
    %c0_i32_0 = arith.constant 0 : i32
    return %c0_i32, %arg1 : i32, i32
  }
  func.func @transform_3(%arg0: i32, %arg1: i32) -> (i32, i32) {
    %c0_i32 = arith.constant 0 : i32
    return %arg0, %arg1 : i32, i32
  }
}

</mosaic_0001>

<llo_original>
// kernel: fc_forward.1
$region0: #{fc_forward.1}
  #allocation0 [shape = 'u32[]', space=smem, size = 0x4, offset = 0x4, fixed_abs, tag = 'smem constant byte address 0x4 - core index']
  #allocation1 [shape = 'u32[72,128]{1,0:T(1,128)}', space=vmem, size = 0x9000, scoped, tag = 'internal scratch']
  %s0 = inlined_call_operand.hbm [shape: f32[8,2048], index: 0, kind: input, shape index: {}]
  %s1 = inlined_call_operand.hbm [shape: bf16[128,2048], index: 1, kind: input, shape index: {}]
  %s2 = inlined_call_operand.vmem [shape: f32[1,128], index: 2, kind: input, shape index: {}]
  %s3 = inlined_call_operand.hbm [shape: f32[8,128], index: 3, kind: output, shape index: {}]
  %s4 = sld [smem:[#allocation0]]
  $region30: #{fc_forward.1} parent=0
    _
  %s6 = ssub.s32 1, %s4
  %s7 = scalar_select 0, %s6, %s4
  $region1: #{fc_forward.1} parent=0
    #allocation2 [shape = 'u8[65536]{0}', space=vmem, size = 0x10000, scoped, tag = 'input window, operand 0, single buffered']
    #allocation3 [shape = 's32[1]{0}', space=sflag, size = 0x4, scoped, tag = 'scoped memory for fc_forward.1']
    #allocation4 [shape = 's32[1]{0}', space=sflag, size = 0x4, scoped, tag = 'scoped memory for fc_forward.1']
    #allocation5 [shape = 'u8[524288]{0}', space=vmem, size = 0x80000, scoped, tag = 'input window, operand 1, single buffered']
    #allocation6 [shape = 's32[1]{0}', space=sflag, size = 0x4, scoped, tag = 'scoped memory for fc_forward.1']
    #allocation7 [shape = 'u8[4096]{0}', space=vmem, size = 0x1000, scoped, tag = 'output window, operand 0, single buffered']
    %8 = vsyncpa [#allocation3], 0
    %9 = vsyncpa [#allocation6], 0
    %10 = vsyncpa [#allocation4], 0
    // Predicated region
    $region2: #{fc_forward.1} parent=1 // pred_check
      _
    $region3: #{fc_forward.1} parent=1 // pred_check_branch
      %12 = sbr.rel (0) target = $region5
    $region4: #{fc_forward.1} parent=1 // pred_region
      %14 = vsyncadd [#allocation3], 0
      %s16 = sshll.u32 %s0, 4
      %s17 = int_to_ptr.hbm [resolvable:$true] %s16
      %s18 = sshll.u32 [#allocation2], 4
      %s19 = int_to_ptr.vmem [resolvable:$true] %s18
      %21 = dma.hbm_to_vmem [thread:$0]  %s17, 2048, %s19, [#allocation3]
    $region5: #{fc_forward.1} parent=1 // pred_fallthru
      _
    // Predicated region
    $region6: #{fc_forward.1} parent=1 // pred_check
      _
    $region7: #{fc_forward.1} parent=1 // pred_check_branch
      %23 = sbr.rel (0) target = $region9
    $region8: #{fc_forward.1} parent=1 // pred_region
      %25 = vsyncadd [#allocation6], 0
      %s26 = sshll.u32 %s1, 4
      %s27 = int_to_ptr.hbm [resolvable:$true] %s26
      %s28 = sshll.u32 [#allocation5], 4
      %s29 = int_to_ptr.vmem [resolvable:$true] %s28
      %34 = dma.hbm_to_vmem [thread:$0]  %s27, 16384, %s29, [#allocation6], 1024, 1024, 64
    $region9: #{fc_forward.1} parent=1 // pred_fallthru
      _
    // Predicated region
    $region10: #{fc_forward.1} parent=1 // pred_check
      _
    $region11: #{fc_forward.1} parent=1 // pred_check_branch
      %36 = sbr.rel (0) target = $region13
    $region12: #{fc_forward.1} parent=1 // pred_region
      _
    $region13: #{fc_forward.1} parent=1 // pred_fallthru
      _
    // Predicated region
    $region14: #{fc_forward.1} parent=1 // pred_check
      _
    $region15: #{fc_forward.1} parent=1 // pred_check_branch
      %38 = sbr.rel (0) target = $region17
    $region16: #{fc_forward.1} parent=1 // pred_region
      %40 = dma.done [#allocation3], 2048
    $region17: #{fc_forward.1} parent=1 // pred_fallthru
      _
    // Predicated region
    $region18: #{fc_forward.1} parent=1 // pred_check
      _
    $region19: #{fc_forward.1} parent=1 // pred_check_branch
      %42 = sbr.rel (0) target = $region21
    $region20: #{fc_forward.1} parent=1 // pred_region
      %44 = dma.done [#allocation6], 16384
    $region21: #{fc_forward.1} parent=1 // pred_fallthru
      _
    %v45 = vld [vmem:[#allocation2] sm:$0xff]
    %v46 = vld [vmem:[#allocation2 + $0x8] sm:$0xff]
    %v47 = vld [vmem:[#allocation2 + $0x10] sm:$0xff]
    %v48 = vld [vmem:[#allocation2 + $0x18] sm:$0xff]
    %v49 = vld [vmem:[#allocation2 + $0x20] sm:$0xff]
    %v50 = vld [vmem:[#allocation2 + $0x28] sm:$0xff]
    %v51 = vld [vmem:[#allocation2 + $0x30] sm:$0xff]
    %v52 = vld [vmem:[#allocation2 + $0x38] sm:$0xff]
    %v53 = vld [vmem:[#allocation2 + $0x40] sm:$0xff]
    %v54 = vld [vmem:[#allocation2 + $0x48] sm:$0xff]
    %v55 = vld [vmem:[#allocation2 + $0x50] sm:$0xff]
    %v56 = vld [vmem:[#allocation2 + $0x58] sm:$0xff]
    %v57 = vld [vmem:[#allocation2 + $0x60] sm:$0xff]
    %v58 = vld [vmem:[#allocation2 + $0x68] sm:$0xff]
    %v59 = vld [vmem:[#allocation2 + $0x70] sm:$0xff]
    %v60 = vld [vmem:[#allocation2 + $0x78] sm:$0xff]
    %v61 = vpack.c.bf16 %v45, %v45
    %v62 = vpack.c.bf16 %v46, %v46
    %v63 = vpack.c.bf16 %v47, %v47
    %v64 = vpack.c.bf16 %v48, %v48
    %v65 = vpack.c.bf16 %v49, %v49
    %v66 = vpack.c.bf16 %v50, %v50
    %v67 = vpack.c.bf16 %v51, %v51
    %v68 = vpack.c.bf16 %v52, %v52
    %v69 = vpack.c.bf16 %v53, %v53
    %v70 = vpack.c.bf16 %v54, %v54
    %v71 = vpack.c.bf16 %v55, %v55
    %v72 = vpack.c.bf16 %v56, %v56
    %v73 = vpack.c.bf16 %v57, %v57
    %v74 = vpack.c.bf16 %v58, %v58
    %v75 = vpack.c.bf16 %v59, %v59
    %v76 = vpack.c.bf16 %v60, %v60
    %v77 = vld [vmem:[#allocation5] sm:$0xff]
    %v78 = vld [vmem:[#allocation5 + $0x8] sm:$0xff]
    %v79 = vld [vmem:[#allocation5 + $0x10] sm:$0xff]
    %v80 = vld [vmem:[#allocation5 + $0x18] sm:$0xff]
    %v81 = vld [vmem:[#allocation5 + $0x20] sm:$0xff]
    %v82 = vld [vmem:[#allocation5 + $0x28] sm:$0xff]
    %v83 = vld [vmem:[#allocation5 + $0x30] sm:$0xff]
    %v84 = vld [vmem:[#allocation5 + $0x38] sm:$0xff]
    %v85 = vld [vmem:[#allocation5 + $0x40] sm:$0xff]
    %v86 = vld [vmem:[#allocation5 + $0x48] sm:$0xff]
    %v87 = vld [vmem:[#allocation5 + $0x50] sm:$0xff]
    %v88 = vld [vmem:[#allocation5 + $0x58] sm:$0xff]
    %v89 = vld [vmem:[#allocation5 + $0x60] sm:$0xff]
    %v90 = vld [vmem:[#allocation5 + $0x68] sm:$0xff]
    %v91 = vld [vmem:[#allocation5 + $0x70] sm:$0xff]
    %v92 = vld [vmem:[#allocation5 + $0x78] sm:$0xff]
    %v93 = vld [vmem:[#allocation5 + $0x80] sm:$0xff]
    %v94 = vld [vmem:[#allocation5 + $0x88] sm:$0xff]
    %v95 = vld [vmem:[#allocation5 + $0x90] sm:$0xff]
    %v96 = vld [vmem:[#allocation5 + $0x98] sm:$0xff]
    %v97 = vld [vmem:[#allocation5 + $0xa0] sm:$0xff]
    %v98 = vld [vmem:[#allocation5 + $0xa8] sm:$0xff]
    %v99 = vld [vmem:[#allocation5 + $0xb0] sm:$0xff]
    %v100 = vld [vmem:[#allocation5 + $0xb8] sm:$0xff]
    %v101 = vld [vmem:[#allocation5 + $0xc0] sm:$0xff]
    %v102 = vld [vmem:[#allocation5 + $0xc8] sm:$0xff]
    %v103 = vld [vmem:[#allocation5 + $0xd0] sm:$0xff]
    %v104 = vld [vmem:[#allocation5 + $0xd8] sm:$0xff]
    %v105 = vld [vmem:[#allocation5 + $0xe0] sm:$0xff]
    %v106 = vld [vmem:[#allocation5 + $0xe8] sm:$0xff]
    %v107 = vld [vmem:[#allocation5 + $0xf0] sm:$0xff]
    %v108 = vld [vmem:[#allocation5 + $0xf8] sm:$0xff]
    %v109 = vld [vmem:[#allocation5 + $0x100] sm:$0xff]
    %v110 = vld [vmem:[#allocation5 + $0x108] sm:$0xff]
    %v111 = vld [vmem:[#allocation5 + $0x110] sm:$0xff]
    %v112 = vld [vmem:[#allocation5 + $0x118] sm:$0xff]
    %v113 = vld [vmem:[#allocation5 + $0x120] sm:$0xff]
    %v114 = vld [vmem:[#allocation5 + $0x128] sm:$0xff]
    %v115 = vld [vmem:[#allocation5 + $0x130] sm:$0xff]
    %v116 = vld [vmem:[#allocation5 + $0x138] sm:$0xff]
    %v117 = vld [vmem:[#allocation5 + $0x140] sm:$0xff]
    %v118 = vld [vmem:[#allocation5 + $0x148] sm:$0xff]
    %v119 = vld [vmem:[#allocation5 + $0x150] sm:$0xff]
    %v120 = vld [vmem:[#allocation5 + $0x158] sm:$0xff]
    %v121 = vld [vmem:[#allocation5 + $0x160] sm:$0xff]
    %v122 = vld [vmem:[#allocation5 + $0x168] sm:$0xff]
    %v123 = vld [vmem:[#allocation5 + $0x170] sm:$0xff]
    %v124 = vld [vmem:[#allocation5 + $0x178] sm:$0xff]
    %v125 = vld [vmem:[#allocation5 + $0x180] sm:$0xff]
    %v126 = vld [vmem:[#allocation5 + $0x188] sm:$0xff]
    %v127 = vld [vmem:[#allocation5 + $0x190] sm:$0xff]
    %v128 = vld [vmem:[#allocation5 + $0x198] sm:$0xff]
    %v129 = vld [vmem:[#allocation5 + $0x1a0] sm:$0xff]
    %v130 = vld [vmem:[#allocation5 + $0x1a8] sm:$0xff]
    %v131 = vld [vmem:[#allocation5 + $0x1b0] sm:$0xff]
    %v132 = vld [vmem:[#allocation5 + $0x1b8] sm:$0xff]
    %v133 = vld [vmem:[#allocation5 + $0x1c0] sm:$0xff]
    %v134 = vld [vmem:[#allocation5 + $0x1c8] sm:$0xff]
    %v135 = vld [vmem:[#allocation5 + $0x1d0] sm:$0xff]
    %v136 = vld [vmem:[#allocation5 + $0x1d8] sm:$0xff]
    %v137 = vld [vmem:[#allocation5 + $0x1e0] sm:$0xff]
    %v138 = vld [vmem:[#allocation5 + $0x1e8] sm:$0xff]
    %v139 = vld [vmem:[#allocation5 + $0x1f0] sm:$0xff]
    %v140 = vld [vmem:[#allocation5 + $0x1f8] sm:$0xff]
    %v141 = vld [vmem:[#allocation5 + $0x200] sm:$0xff]
    %v142 = vld [vmem:[#allocation5 + $0x208] sm:$0xff]
    %v143 = vld [vmem:[#allocation5 + $0x210] sm:$0xff]
    %v144 = vld [vmem:[#allocation5 + $0x218] sm:$0xff]
    %v145 = vld [vmem:[#allocation5 + $0x220] sm:$0xff]
    %v146 = vld [vmem:[#allocation5 + $0x228] sm:$0xff]
    %v147 = vld [vmem:[#allocation5 + $0x230] sm:$0xff]
    %v148 = vld [vmem:[#allocation5 + $0x238] sm:$0xff]
    %v149 = vld [vmem:[#allocation5 + $0x240] sm:$0xff]
    %v150 = vld [vmem:[#allocation5 + $0x248] sm:$0xff]
    %v151 = vld [vmem:[#allocation5 + $0x250] sm:$0xff]
    %v152 = vld [vmem:[#allocation5 + $0x258] sm:$0xff]
    %v153 = vld [vmem:[#allocation5 + $0x260] sm:$0xff]
    %v154 = vld [vmem:[#allocation5 + $0x268] sm:$0xff]
    %v155 = vld [vmem:[#allocation5 + $0x270] sm:$0xff]
    %v156 = vld [vmem:[#allocation5 + $0x278] sm:$0xff]
    %v157 = vld [vmem:[#allocation5 + $0x280] sm:$0xff]
    %v158 = vld [vmem:[#allocation5 + $0x288] sm:$0xff]
    %v159 = vld [vmem:[#allocation5 + $0x290] sm:$0xff]
    %v160 = vld [vmem:[#allocation5 + $0x298] sm:$0xff]
    %v161 = vld [vmem:[#allocation5 + $0x2a0] sm:$0xff]
    %v162 = vld [vmem:[#allocation5 + $0x2a8] sm:$0xff]
    %v163 = vld [vmem:[#allocation5 + $0x2b0] sm:$0xff]
    %v164 = vld [vmem:[#allocation5 + $0x2b8] sm:$0xff]
    %v165 = vld [vmem:[#allocation5 + $0x2c0] sm:$0xff]
    %v166 = vld [vmem:[#allocation5 + $0x2c8] sm:$0xff]
    %v167 = vld [vmem:[#allocation5 + $0x2d0] sm:$0xff]
    %v168 = vld [vmem:[#allocation5 + $0x2d8] sm:$0xff]
    %v169 = vld [vmem:[#allocation5 + $0x2e0] sm:$0xff]
    %v170 = vld [vmem:[#allocation5 + $0x2e8] sm:$0xff]
    %v171 = vld [vmem:[#allocation5 + $0x2f0] sm:$0xff]
    %v172 = vld [vmem:[#allocation5 + $0x2f8] sm:$0xff]
    %v173 = vld [vmem:[#allocation5 + $0x300] sm:$0xff]
    %v174 = vld [vmem:[#allocation5 + $0x308] sm:$0xff]
    %v175 = vld [vmem:[#allocation5 + $0x310] sm:$0xff]
    %v176 = vld [vmem:[#allocation5 + $0x318] sm:$0xff]
    %v177 = vld [vmem:[#allocation5 + $0x320] sm:$0xff]
    %v178 = vld [vmem:[#allocation5 + $0x328] sm:$0xff]
    %v179 = vld [vmem:[#allocation5 + $0x330] sm:$0xff]
    %v180 = vld [vmem:[#allocation5 + $0x338] sm:$0xff]
    %v181 = vld [vmem:[#allocation5 + $0x340] sm:$0xff]
    %v182 = vld [vmem:[#allocation5 + $0x348] sm:$0xff]
    %v183 = vld [vmem:[#allocation5 + $0x350] sm:$0xff]
    %v184 = vld [vmem:[#allocation5 + $0x358] sm:$0xff]
    %v185 = vld [vmem:[#allocation5 + $0x360] sm:$0xff]
    %v186 = vld [vmem:[#allocation5 + $0x368] sm:$0xff]
    %v187 = vld [vmem:[#allocation5 + $0x370] sm:$0xff]
    %v188 = vld [vmem:[#allocation5 + $0x378] sm:$0xff]
    %v189 = vld [vmem:[#allocation5 + $0x380] sm:$0xff]
    %v190 = vld [vmem:[#allocation5 + $0x388] sm:$0xff]
    %v191 = vld [vmem:[#allocation5 + $0x390] sm:$0xff]
    %v192 = vld [vmem:[#allocation5 + $0x398] sm:$0xff]
    %v193 = vld [vmem:[#allocation5 + $0x3a0] sm:$0xff]
    %v194 = vld [vmem:[#allocation5 + $0x3a8] sm:$0xff]
    %v195 = vld [vmem:[#allocation5 + $0x3b0] sm:$0xff]
    %v196 = vld [vmem:[#allocation5 + $0x3b8] sm:$0xff]
    %v197 = vld [vmem:[#allocation5 + $0x3c0] sm:$0xff]
    %v198 = vld [vmem:[#allocation5 + $0x3c8] sm:$0xff]
    %v199 = vld [vmem:[#allocation5 + $0x3d0] sm:$0xff]
    %v200 = vld [vmem:[#allocation5 + $0x3d8] sm:$0xff]
    %v201 = vld [vmem:[#allocation5 + $0x3e0] sm:$0xff]
    %v202 = vld [vmem:[#allocation5 + $0x3e8] sm:$0xff]
    %v203 = vld [vmem:[#allocation5 + $0x3f0] sm:$0xff]
    %v204 = vld [vmem:[#allocation5 + $0x3f8] sm:$0xff]
    %v205 = vld [vmem:[%s2] sm:$0x1]
    %v207 = vperm.slane %v205, 0
    %v337 = vunpack.c.l.b16 %v77
    %v338 = vunpack.c.h.b16 %v77
    %v339 = vunpack.c.l.b16 %v78
    %v340 = vunpack.c.h.b16 %v78
    %v341 = vunpack.c.l.b16 %v79
    %v342 = vunpack.c.h.b16 %v79
    %v343 = vunpack.c.l.b16 %v80
    %v344 = vunpack.c.h.b16 %v80
    %v345 = vunpack.c.l.b16 %v81
    %v346 = vunpack.c.h.b16 %v81
    %v347 = vunpack.c.l.b16 %v82
    %v348 = vunpack.c.h.b16 %v82
    %v349 = vunpack.c.l.b16 %v83
    %v350 = vunpack.c.h.b16 %v83
    %v351 = vunpack.c.l.b16 %v84
    %v352 = vunpack.c.h.b16 %v84
    %v353 = vunpack.c.l.b16 %v85
    %v354 = vunpack.c.h.b16 %v85
    %v355 = vunpack.c.l.b16 %v86
    %v356 = vunpack.c.h.b16 %v86
    %v357 = vunpack.c.l.b16 %v87
    %v358 = vunpack.c.h.b16 %v87
    %v359 = vunpack.c.l.b16 %v88
    %v360 = vunpack.c.h.b16 %v88
    %v361 = vunpack.c.l.b16 %v89
    %v362 = vunpack.c.h.b16 %v89
    %v363 = vunpack.c.l.b16 %v90
    %v364 = vunpack.c.h.b16 %v90
    %v365 = vunpack.c.l.b16 %v91
    %v366 = vunpack.c.h.b16 %v91
    %v367 = vunpack.c.l.b16 %v92
    %v368 = vunpack.c.h.b16 %v92
    %v369 = vunpack.c.l.b16 %v93
    %v370 = vunpack.c.h.b16 %v93
    %v371 = vunpack.c.l.b16 %v94
    %v372 = vunpack.c.h.b16 %v94
    %v373 = vunpack.c.l.b16 %v95
    %v374 = vunpack.c.h.b16 %v95
    %v375 = vunpack.c.l.b16 %v96
    %v376 = vunpack.c.h.b16 %v96
    %v377 = vunpack.c.l.b16 %v97
    %v378 = vunpack.c.h.b16 %v97
    %v379 = vunpack.c.l.b16 %v98
    %v380 = vunpack.c.h.b16 %v98
    %v381 = vunpack.c.l.b16 %v99
    %v382 = vunpack.c.h.b16 %v99
    %v383 = vunpack.c.l.b16 %v100
    %v384 = vunpack.c.h.b16 %v100
    %v385 = vunpack.c.l.b16 %v101
    %v386 = vunpack.c.h.b16 %v101
    %v387 = vunpack.c.l.b16 %v102
    %v388 = vunpack.c.h.b16 %v102
    %v389 = vunpack.c.l.b16 %v103
    %v390 = vunpack.c.h.b16 %v103
    %v391 = vunpack.c.l.b16 %v104
    %v392 = vunpack.c.h.b16 %v104
    %v393 = vunpack.c.l.b16 %v105
    %v394 = vunpack.c.h.b16 %v105
    %v395 = vunpack.c.l.b16 %v106
    %v396 = vunpack.c.h.b16 %v106
    %v397 = vunpack.c.l.b16 %v107
    %v398 = vunpack.c.h.b16 %v107
    %v399 = vunpack.c.l.b16 %v108
    %v400 = vunpack.c.h.b16 %v108
    %v401 = vunpack.c.l.b16 %v109
    %v402 = vunpack.c.h.b16 %v109
    %v403 = vunpack.c.l.b16 %v110
    %v404 = vunpack.c.h.b16 %v110
    %v405 = vunpack.c.l.b16 %v111
    %v406 = vunpack.c.h.b16 %v111
    %v407 = vunpack.c.l.b16 %v112
    %v408 = vunpack.c.h.b16 %v112
    %v409 = vunpack.c.l.b16 %v113
    %v410 = vunpack.c.h.b16 %v113
    %v411 = vunpack.c.l.b16 %v114
    %v412 = vunpack.c.h.b16 %v114
    %v413 = vunpack.c.l.b16 %v115
    %v414 = vunpack.c.h.b16 %v115
    %v415 = vunpack.c.l.b16 %v116
    %v416 = vunpack.c.h.b16 %v116
    %v417 = vunpack.c.l.b16 %v117
    %v418 = vunpack.c.h.b16 %v117
    %v419 = vunpack.c.l.b16 %v118
    %v420 = vunpack.c.h.b16 %v118
    %v421 = vunpack.c.l.b16 %v119
    %v422 = vunpack.c.h.b16 %v119
    %v423 = vunpack.c.l.b16 %v120
    %v424 = vunpack.c.h.b16 %v120
    %v425 = vunpack.c.l.b16 %v121
    %v426 = vunpack.c.h.b16 %v121
    %v427 = vunpack.c.l.b16 %v122
    %v428 = vunpack.c.h.b16 %v122
    %v429 = vunpack.c.l.b16 %v123
    %v430 = vunpack.c.h.b16 %v123
    %v431 = vunpack.c.l.b16 %v124
    %v432 = vunpack.c.h.b16 %v124
    %v433 = vunpack.c.l.b16 %v125
    %v434 = vunpack.c.h.b16 %v125
    %v435 = vunpack.c.l.b16 %v126
    %v436 = vunpack.c.h.b16 %v126
    %v437 = vunpack.c.l.b16 %v127
    %v438 = vunpack.c.h.b16 %v127
    %v439 = vunpack.c.l.b16 %v128
    %v440 = vunpack.c.h.b16 %v128
    %v441 = vunpack.c.l.b16 %v129
    %v442 = vunpack.c.h.b16 %v129
    %v443 = vunpack.c.l.b16 %v130
    %v444 = vunpack.c.h.b16 %v130
    %v445 = vunpack.c.l.b16 %v131
    %v446 = vunpack.c.h.b16 %v131
    %v447 = vunpack.c.l.b16 %v132
    %v448 = vunpack.c.h.b16 %v132
    %v449 = vunpack.c.l.b16 %v133
    %v450 = vunpack.c.h.b16 %v133
    %v451 = vunpack.c.l.b16 %v134
    %v452 = vunpack.c.h.b16 %v134
    %v453 = vunpack.c.l.b16 %v135
    %v454 = vunpack.c.h.b16 %v135
    %v455 = vunpack.c.l.b16 %v136
    %v456 = vunpack.c.h.b16 %v136
    %v457 = vunpack.c.l.b16 %v137
    %v458 = vunpack.c.h.b16 %v137
    %v459 = vunpack.c.l.b16 %v138
    %v460 = vunpack.c.h.b16 %v138
    %v461 = vunpack.c.l.b16 %v139
    %v462 = vunpack.c.h.b16 %v139
    %v463 = vunpack.c.l.b16 %v140
    %v464 = vunpack.c.h.b16 %v140
    %v465 = vunpack.c.l.b16 %v141
    %v466 = vunpack.c.h.b16 %v141
    %v467 = vunpack.c.l.b16 %v142
    %v468 = vunpack.c.h.b16 %v142
    %v469 = vunpack.c.l.b16 %v143
    %v470 = vunpack.c.h.b16 %v143
    %v471 = vunpack.c.l.b16 %v144
    %v472 = vunpack.c.h.b16 %v144
    %v473 = vunpack.c.l.b16 %v145
    %v474 = vunpack.c.h.b16 %v145
    %v475 = vunpack.c.l.b16 %v146
    %v476 = vunpack.c.h.b16 %v146
    %v477 = vunpack.c.l.b16 %v147
    %v478 = vunpack.c.h.b16 %v147
    %v479 = vunpack.c.l.b16 %v148
    %v480 = vunpack.c.h.b16 %v148
    %v481 = vunpack.c.l.b16 %v149
    %v482 = vunpack.c.h.b16 %v149
    %v483 = vunpack.c.l.b16 %v150
    %v484 = vunpack.c.h.b16 %v150
    %v485 = vunpack.c.l.b16 %v151
    %v486 = vunpack.c.h.b16 %v151
    %v487 = vunpack.c.l.b16 %v152
    %v488 = vunpack.c.h.b16 %v152
    %v489 = vunpack.c.l.b16 %v153
    %v490 = vunpack.c.h.b16 %v153
    %v491 = vunpack.c.l.b16 %v154
    %v492 = vunpack.c.h.b16 %v154
    %v493 = vunpack.c.l.b16 %v155
    %v494 = vunpack.c.h.b16 %v155
    %v495 = vunpack.c.l.b16 %v156
    %v496 = vunpack.c.h.b16 %v156
    %v497 = vunpack.c.l.b16 %v157
    %v498 = vunpack.c.h.b16 %v157
    %v499 = vunpack.c.l.b16 %v158
    %v500 = vunpack.c.h.b16 %v158
    %v501 = vunpack.c.l.b16 %v159
    %v502 = vunpack.c.h.b16 %v159
    %v503 = vunpack.c.l.b16 %v160
    %v504 = vunpack.c.h.b16 %v160
    %v505 = vunpack.c.l.b16 %v161
    %v506 = vunpack.c.h.b16 %v161
    %v507 = vunpack.c.l.b16 %v162
    %v508 = vunpack.c.h.b16 %v162
    %v509 = vunpack.c.l.b16 %v163
    %v510 = vunpack.c.h.b16 %v163
    %v511 = vunpack.c.l.b16 %v164
    %v512 = vunpack.c.h.b16 %v164
    %v513 = vunpack.c.l.b16 %v165
    %v514 = vunpack.c.h.b16 %v165
    %v515 = vunpack.c.l.b16 %v166
    %v516 = vunpack.c.h.b16 %v166
    %v517 = vunpack.c.l.b16 %v167
    %v518 = vunpack.c.h.b16 %v167
    %v519 = vunpack.c.l.b16 %v168
    %v520 = vunpack.c.h.b16 %v168
    %v521 = vunpack.c.l.b16 %v169
    %v522 = vunpack.c.h.b16 %v169
    %v523 = vunpack.c.l.b16 %v170
    %v524 = vunpack.c.h.b16 %v170
    %v525 = vunpack.c.l.b16 %v171
    %v526 = vunpack.c.h.b16 %v171
    %v527 = vunpack.c.l.b16 %v172
    %v528 = vunpack.c.h.b16 %v172
    %v529 = vunpack.c.l.b16 %v173
    %v530 = vunpack.c.h.b16 %v173
    %v531 = vunpack.c.l.b16 %v174
    %v532 = vunpack.c.h.b16 %v174
    %v533 = vunpack.c.l.b16 %v175
    %v534 = vunpack.c.h.b16 %v175
    %v535 = vunpack.c.l.b16 %v176
    %v536 = vunpack.c.h.b16 %v176
    %v537 = vunpack.c.l.b16 %v177
    %v538 = vunpack.c.h.b16 %v177
    %v539 = vunpack.c.l.b16 %v178
    %v540 = vunpack.c.h.b16 %v178
    %v541 = vunpack.c.l.b16 %v179
    %v542 = vunpack.c.h.b16 %v179
    %v543 = vunpack.c.l.b16 %v180
    %v544 = vunpack.c.h.b16 %v180
    %v545 = vunpack.c.l.b16 %v181
    %v546 = vunpack.c.h.b16 %v181
    %v547 = vunpack.c.l.b16 %v182
    %v548 = vunpack.c.h.b16 %v182
    %v549 = vunpack.c.l.b16 %v183
    %v550 = vunpack.c.h.b16 %v183
    %v551 = vunpack.c.l.b16 %v184
    %v552 = vunpack.c.h.b16 %v184
    %v553 = vunpack.c.l.b16 %v185
    %v554 = vunpack.c.h.b16 %v185
    %v555 = vunpack.c.l.b16 %v186
    %v556 = vunpack.c.h.b16 %v186
    %v557 = vunpack.c.l.b16 %v187
    %v558 = vunpack.c.h.b16 %v187
    %v559 = vunpack.c.l.b16 %v188
    %v560 = vunpack.c.h.b16 %v188
    %v561 = vunpack.c.l.b16 %v189
    %v562 = vunpack.c.h.b16 %v189
    %v563 = vunpack.c.l.b16 %v190
    %v564 = vunpack.c.h.b16 %v190
    %v565 = vunpack.c.l.b16 %v191
    %v566 = vunpack.c.h.b16 %v191
    %v567 = vunpack.c.l.b16 %v192
    %v568 = vunpack.c.h.b16 %v192
    %v569 = vunpack.c.l.b16 %v193
    %v570 = vunpack.c.h.b16 %v193
    %v571 = vunpack.c.l.b16 %v194
    %v572 = vunpack.c.h.b16 %v194
    %v573 = vunpack.c.l.b16 %v195
    %v574 = vunpack.c.h.b16 %v195
    %v575 = vunpack.c.l.b16 %v196
    %v576 = vunpack.c.h.b16 %v196
    %v577 = vunpack.c.l.b16 %v197
    %v578 = vunpack.c.h.b16 %v197
    %v579 = vunpack.c.l.b16 %v198
    %v580 = vunpack.c.h.b16 %v198
    %v581 = vunpack.c.l.b16 %v199
    %v582 = vunpack.c.h.b16 %v199
    %v583 = vunpack.c.l.b16 %v200
    %v584 = vunpack.c.h.b16 %v200
    %v585 = vunpack.c.l.b16 %v201
    %v586 = vunpack.c.h.b16 %v201
    %v587 = vunpack.c.l.b16 %v202
    %v588 = vunpack.c.h.b16 %v202
    %v589 = vunpack.c.l.b16 %v203
    %v590 = vunpack.c.h.b16 %v203
    %v591 = vunpack.c.l.b16 %v204
    %v592 = vunpack.c.h.b16 %v204
    %v593 = vpack.c.b16 %v353, %v337
    %v594 = vpack.c.b16 %v354, %v338
    %v595 = vpack.c.b16 %v355, %v339
    %v596 = vpack.c.b16 %v356, %v340
    %v597 = vpack.c.b16 %v357, %v341
    %v598 = vpack.c.b16 %v358, %v342
    %v599 = vpack.c.b16 %v359, %v343
    %v600 = vpack.c.b16 %v360, %v344
    %v601 = vpack.c.b16 %v361, %v345
    %v602 = vpack.c.b16 %v362, %v346
    %v603 = vpack.c.b16 %v363, %v347
    %v604 = vpack.c.b16 %v364, %v348
    %v605 = vpack.c.b16 %v365, %v349
    %v606 = vpack.c.b16 %v366, %v350
    %v607 = vpack.c.b16 %v367, %v351
    %v608 = vpack.c.b16 %v368, %v352
    %v609 = vpack.c.b16 %v385, %v369
    %v610 = vpack.c.b16 %v386, %v370
    %v611 = vpack.c.b16 %v387, %v371
    %v612 = vpack.c.b16 %v388, %v372
    %v613 = vpack.c.b16 %v389, %v373
    %v614 = vpack.c.b16 %v390, %v374
    %v615 = vpack.c.b16 %v391, %v375
    %v616 = vpack.c.b16 %v392, %v376
    %v617 = vpack.c.b16 %v393, %v377
    %v618 = vpack.c.b16 %v394, %v378
    %v619 = vpack.c.b16 %v395, %v379
    %v620 = vpack.c.b16 %v396, %v380
    %v621 = vpack.c.b16 %v397, %v381
    %v622 = vpack.c.b16 %v398, %v382
    %v623 = vpack.c.b16 %v399, %v383
    %v624 = vpack.c.b16 %v400, %v384
    %v625 = vpack.c.b16 %v417, %v401
    %v626 = vpack.c.b16 %v418, %v402
    %v627 = vpack.c.b16 %v419, %v403
    %v628 = vpack.c.b16 %v420, %v404
    %v629 = vpack.c.b16 %v421, %v405
    %v630 = vpack.c.b16 %v422, %v406
    %v631 = vpack.c.b16 %v423, %v407
    %v632 = vpack.c.b16 %v424, %v408
    %v633 = vpack.c.b16 %v425, %v409
    %v634 = vpack.c.b16 %v426, %v410
    %v635 = vpack.c.b16 %v427, %v411
    %v636 = vpack.c.b16 %v428, %v412
    %v637 = vpack.c.b16 %v429, %v413
    %v638 = vpack.c.b16 %v430, %v414
    %v639 = vpack.c.b16 %v431, %v415
    %v640 = vpack.c.b16 %v432, %v416
    %v641 = vpack.c.b16 %v449, %v433
    %v642 = vpack.c.b16 %v450, %v434
    %v643 = vpack.c.b16 %v451, %v435
    %v644 = vpack.c.b16 %v452, %v436
    %v645 = vpack.c.b16 %v453, %v437
    %v646 = vpack.c.b16 %v454, %v438
    %v647 = vpack.c.b16 %v455, %v439
    %v648 = vpack.c.b16 %v456, %v440
    %v649 = vpack.c.b16 %v457, %v441
    %v650 = vpack.c.b16 %v458, %v442
    %v651 = vpack.c.b16 %v459, %v443
    %v652 = vpack.c.b16 %v460, %v444
    %v653 = vpack.c.b16 %v461, %v445
    %v654 = vpack.c.b16 %v462, %v446
    %v655 = vpack.c.b16 %v463, %v447
    %v656 = vpack.c.b16 %v464, %v448
    %v657 = vpack.c.b16 %v481, %v465
    %v658 = vpack.c.b16 %v482, %v466
    %v659 = vpack.c.b16 %v483, %v467
    %v660 = vpack.c.b16 %v484, %v468
    %v661 = vpack.c.b16 %v485, %v469
    %v662 = vpack.c.b16 %v486, %v470
    %v663 = vpack.c.b16 %v487, %v471
    %v664 = vpack.c.b16 %v488, %v472
    %v665 = vpack.c.b16 %v489, %v473
    %v666 = vpack.c.b16 %v490, %v474
    %v667 = vpack.c.b16 %v491, %v475
    %v668 = vpack.c.b16 %v492, %v476
    %v669 = vpack.c.b16 %v493, %v477
    %v670 = vpack.c.b16 %v494, %v478
    %v671 = vpack.c.b16 %v495, %v479
    %v672 = vpack.c.b16 %v496, %v480
    %v673 = vpack.c.b16 %v513, %v497
    %v674 = vpack.c.b16 %v514, %v498
    %v675 = vpack.c.b16 %v515, %v499
    %v676 = vpack.c.b16 %v516, %v500
    %v677 = vpack.c.b16 %v517, %v501
    %v678 = vpack.c.b16 %v518, %v502
    %v679 = vpack.c.b16 %v519, %v503
    %v680 = vpack.c.b16 %v520, %v504
    %v681 = vpack.c.b16 %v521, %v505
    %v682 = vpack.c.b16 %v522, %v506
    %v683 = vpack.c.b16 %v523, %v507
    %v684 = vpack.c.b16 %v524, %v508
    %v685 = vpack.c.b16 %v525, %v509
    %v686 = vpack.c.b16 %v526, %v510
    %v687 = vpack.c.b16 %v527, %v511
    %v688 = vpack.c.b16 %v528, %v512
    %v689 = vpack.c.b16 %v545, %v529
    %v690 = vpack.c.b16 %v546, %v530
    %v691 = vpack.c.b16 %v547, %v531
    %v692 = vpack.c.b16 %v548, %v532
    %v693 = vpack.c.b16 %v549, %v533
    %v694 = vpack.c.b16 %v550, %v534
    %v695 = vpack.c.b16 %v551, %v535
    %v696 = vpack.c.b16 %v552, %v536
    %v697 = vpack.c.b16 %v553, %v537
    %v698 = vpack.c.b16 %v554, %v538
    %v699 = vpack.c.b16 %v555, %v539
    %v700 = vpack.c.b16 %v556, %v540
    %v701 = vpack.c.b16 %v557, %v541
    %v702 = vpack.c.b16 %v558, %v542
    %v703 = vpack.c.b16 %v559, %v543
    %v704 = vpack.c.b16 %v560, %v544
    %v705 = vpack.c.b16 %v577, %v561
    %v706 = vpack.c.b16 %v578, %v562
    %v707 = vpack.c.b16 %v579, %v563
    %v708 = vpack.c.b16 %v580, %v564
    %v709 = vpack.c.b16 %v581, %v565
    %v710 = vpack.c.b16 %v582, %v566
    %v711 = vpack.c.b16 %v583, %v567
    %v712 = vpack.c.b16 %v584, %v568
    %v713 = vpack.c.b16 %v585, %v569
    %v714 = vpack.c.b16 %v586, %v570
    %v715 = vpack.c.b16 %v587, %v571
    %v716 = vpack.c.b16 %v588, %v572
    %v717 = vpack.c.b16 %v589, %v573
    %v718 = vpack.c.b16 %v590, %v574
    %v719 = vpack.c.b16 %v591, %v575
    %v720 = vpack.c.b16 %v592, %v576
    %849 = vmatpush.bf16.xpose.msra.mxu0 %v705
    %850 = vmatpush.bf16.xpose.msra.mxu0 %v689
    %851 = vmatpush.bf16.xpose.msra.mxu0 %v673
    %852 = vmatpush.bf16.xpose.msra.mxu0 %v657
    %853 = vmatpush.bf16.xpose.msra.mxu0 %v641
    %854 = vmatpush.bf16.xpose.msra.mxu0 %v625
    %855 = vmatpush.bf16.xpose.msra.mxu0 %v609
    %856 = vmatpush.bf16.xpose.msra.mxu0 %v593
    %857 = vmatmul.bf16.gmra.mxu0 %v61
    %v858 = vpop.f32.mrf.mxu0
    %v859 = vadd.f32 %v207, %v858
    %v860 = vpop.f32.mrf.mxu0
    %861 = vdwg.mxu0
    %862 = vmatpush.bf16.xpose.msra.mxu0 %v706
    %863 = vmatpush.bf16.xpose.msra.mxu0 %v690
    %864 = vmatpush.bf16.xpose.msra.mxu0 %v674
    %865 = vmatpush.bf16.xpose.msra.mxu0 %v658
    %866 = vmatpush.bf16.xpose.msra.mxu0 %v642
    %867 = vmatpush.bf16.xpose.msra.mxu0 %v626
    %868 = vmatpush.bf16.xpose.msra.mxu0 %v610
    %869 = vmatpush.bf16.xpose.msra.mxu0 %v594
    %870 = vmatmul.bf16.gmra.mxu0 %v62
    %v871 = vpop.f32.mrf.mxu0
    %v872 = vadd.f32 %v859, %v871
    %v873 = vpop.f32.mrf.mxu0
    %874 = vdwg.mxu0
    %875 = vmatpush.bf16.xpose.msra.mxu0 %v707
    %876 = vmatpush.bf16.xpose.msra.mxu0 %v691
    %877 = vmatpush.bf16.xpose.msra.mxu0 %v675
    %878 = vmatpush.bf16.xpose.msra.mxu0 %v659
    %879 = vmatpush.bf16.xpose.msra.mxu0 %v643
    %880 = vmatpush.bf16.xpose.msra.mxu0 %v627
    %881 = vmatpush.bf16.xpose.msra.mxu0 %v611
    %882 = vmatpush.bf16.xpose.msra.mxu0 %v595
    %883 = vmatmul.bf16.gmra.mxu0 %v63
    %v884 = vpop.f32.mrf.mxu0
    %v885 = vadd.f32 %v872, %v884
    %v886 = vpop.f32.mrf.mxu0
    %887 = vdwg.mxu0
    %888 = vmatpush.bf16.xpose.msra.mxu0 %v708
    %889 = vmatpush.bf16.xpose.msra.mxu0 %v692
    %890 = vmatpush.bf16.xpose.msra.mxu0 %v676
    %891 = vmatpush.bf16.xpose.msra.mxu0 %v660
    %892 = vmatpush.bf16.xpose.msra.mxu0 %v644
    %893 = vmatpush.bf16.xpose.msra.mxu0 %v628
    %894 = vmatpush.bf16.xpose.msra.mxu0 %v612
    %895 = vmatpush.bf16.xpose.msra.mxu0 %v596
    %896 = vmatmul.bf16.gmra.mxu0 %v64
    %v897 = vpop.f32.mrf.mxu0
    %v898 = vadd.f32 %v885, %v897
    %v899 = vpop.f32.mrf.mxu0
    %900 = vdwg.mxu0
    %901 = vmatpush.bf16.xpose.msra.mxu0 %v709
    %902 = vmatpush.bf16.xpose.msra.mxu0 %v693
    %903 = vmatpush.bf16.xpose.msra.mxu0 %v677
    %904 = vmatpush.bf16.xpose.msra.mxu0 %v661
    %905 = vmatpush.bf16.xpose.msra.mxu0 %v645
    %906 = vmatpush.bf16.xpose.msra.mxu0 %v629
    %907 = vmatpush.bf16.xpose.msra.mxu0 %v613
    %908 = vmatpush.bf16.xpose.msra.mxu0 %v597
    %909 = vmatmul.bf16.gmra.mxu0 %v65
    %v910 = vpop.f32.mrf.mxu0
    %v911 = vadd.f32 %v898, %v910
    %v912 = vpop.f32.mrf.mxu0
    %913 = vdwg.mxu0
    %914 = vmatpush.bf16.xpose.msra.mxu0 %v710
    %915 = vmatpush.bf16.xpose.msra.mxu0 %v694
    %916 = vmatpush.bf16.xpose.msra.mxu0 %v678
    %917 = vmatpush.bf16.xpose.msra.mxu0 %v662
    %918 = vmatpush.bf16.xpose.msra.mxu0 %v646
    %919 = vmatpush.bf16.xpose.msra.mxu0 %v630
    %920 = vmatpush.bf16.xpose.msra.mxu0 %v614
    %921 = vmatpush.bf16.xpose.msra.mxu0 %v598
    %922 = vmatmul.bf16.gmra.mxu0 %v66
    %v923 = vpop.f32.mrf.mxu0
    %v924 = vadd.f32 %v911, %v923
    %v925 = vpop.f32.mrf.mxu0
    %926 = vdwg.mxu0
    %927 = vmatpush.bf16.xpose.msra.mxu0 %v711
    %928 = vmatpush.bf16.xpose.msra.mxu0 %v695
    %929 = vmatpush.bf16.xpose.msra.mxu0 %v679
    %930 = vmatpush.bf16.xpose.msra.mxu0 %v663
    %931 = vmatpush.bf16.xpose.msra.mxu0 %v647
    %932 = vmatpush.bf16.xpose.msra.mxu0 %v631
    %933 = vmatpush.bf16.xpose.msra.mxu0 %v615
    %934 = vmatpush.bf16.xpose.msra.mxu0 %v599
    %935 = vmatmul.bf16.gmra.mxu0 %v67
    %v936 = vpop.f32.mrf.mxu0
    %v937 = vadd.f32 %v924, %v936
    %v938 = vpop.f32.mrf.mxu0
    %939 = vdwg.mxu0
    %940 = vmatpush.bf16.xpose.msra.mxu0 %v712
    %941 = vmatpush.bf16.xpose.msra.mxu0 %v696
    %942 = vmatpush.bf16.xpose.msra.mxu0 %v680
    %943 = vmatpush.bf16.xpose.msra.mxu0 %v664
    %944 = vmatpush.bf16.xpose.msra.mxu0 %v648
    %945 = vmatpush.bf16.xpose.msra.mxu0 %v632
    %946 = vmatpush.bf16.xpose.msra.mxu0 %v616
    %947 = vmatpush.bf16.xpose.msra.mxu0 %v600
    %948 = vmatmul.bf16.gmra.mxu0 %v68
    %v949 = vpop.f32.mrf.mxu0
    %v950 = vadd.f32 %v937, %v949
    %v951 = vpop.f32.mrf.mxu0
    %952 = vdwg.mxu0
    %953 = vmatpush.bf16.xpose.msra.mxu0 %v713
    %954 = vmatpush.bf16.xpose.msra.mxu0 %v697
    %955 = vmatpush.bf16.xpose.msra.mxu0 %v681
    %956 = vmatpush.bf16.xpose.msra.mxu0 %v665
    %957 = vmatpush.bf16.xpose.msra.mxu0 %v649
    %958 = vmatpush.bf16.xpose.msra.mxu0 %v633
    %959 = vmatpush.bf16.xpose.msra.mxu0 %v617
    %960 = vmatpush.bf16.xpose.msra.mxu0 %v601
    %961 = vmatmul.bf16.gmra.mxu0 %v69
    %v962 = vpop.f32.mrf.mxu0
    %v963 = vadd.f32 %v950, %v962
    %v964 = vpop.f32.mrf.mxu0
    %965 = vdwg.mxu0
    %966 = vmatpush.bf16.xpose.msra.mxu0 %v714
    %967 = vmatpush.bf16.xpose.msra.mxu0 %v698
    %968 = vmatpush.bf16.xpose.msra.mxu0 %v682
    %969 = vmatpush.bf16.xpose.msra.mxu0 %v666
    %970 = vmatpush.bf16.xpose.msra.mxu0 %v650
    %971 = vmatpush.bf16.xpose.msra.mxu0 %v634
    %972 = vmatpush.bf16.xpose.msra.mxu0 %v618
    %973 = vmatpush.bf16.xpose.msra.mxu0 %v602
    %974 = vmatmul.bf16.gmra.mxu0 %v70
    %v975 = vpop.f32.mrf.mxu0
    %v976 = vadd.f32 %v963, %v975
    %v977 = vpop.f32.mrf.mxu0
    %978 = vdwg.mxu0
    %979 = vmatpush.bf16.xpose.msra.mxu0 %v715
    %980 = vmatpush.bf16.xpose.msra.mxu0 %v699
    %981 = vmatpush.bf16.xpose.msra.mxu0 %v683
    %982 = vmatpush.bf16.xpose.msra.mxu0 %v667
    %983 = vmatpush.bf16.xpose.msra.mxu0 %v651
    %984 = vmatpush.bf16.xpose.msra.mxu0 %v635
    %985 = vmatpush.bf16.xpose.msra.mxu0 %v619
    %986 = vmatpush.bf16.xpose.msra.mxu0 %v603
    %987 = vmatmul.bf16.gmra.mxu0 %v71
    %v988 = vpop.f32.mrf.mxu0
    %v989 = vadd.f32 %v976, %v988
    %v990 = vpop.f32.mrf.mxu0
    %991 = vdwg.mxu0
    %992 = vmatpush.bf16.xpose.msra.mxu0 %v716
    %993 = vmatpush.bf16.xpose.msra.mxu0 %v700
    %994 = vmatpush.bf16.xpose.msra.mxu0 %v684
    %995 = vmatpush.bf16.xpose.msra.mxu0 %v668
    %996 = vmatpush.bf16.xpose.msra.mxu0 %v652
    %997 = vmatpush.bf16.xpose.msra.mxu0 %v636
    %998 = vmatpush.bf16.xpose.msra.mxu0 %v620
    %999 = vmatpush.bf16.xpose.msra.mxu0 %v604
    %1000 = vmatmul.bf16.gmra.mxu0 %v72
    %v1001 = vpop.f32.mrf.mxu0
    %v1002 = vadd.f32 %v989, %v1001
    %v1003 = vpop.f32.mrf.mxu0
    %1004 = vdwg.mxu0
    %1005 = vmatpush.bf16.xpose.msra.mxu0 %v717
    %1006 = vmatpush.bf16.xpose.msra.mxu0 %v701
    %1007 = vmatpush.bf16.xpose.msra.mxu0 %v685
    %1008 = vmatpush.bf16.xpose.msra.mxu0 %v669
    %1009 = vmatpush.bf16.xpose.msra.mxu0 %v653
    %1010 = vmatpush.bf16.xpose.msra.mxu0 %v637
    %1011 = vmatpush.bf16.xpose.msra.mxu0 %v621
    %1012 = vmatpush.bf16.xpose.msra.mxu0 %v605
    %1013 = vmatmul.bf16.gmra.mxu0 %v73
    %v1014 = vpop.f32.mrf.mxu0
    %v1015 = vadd.f32 %v1002, %v1014
    %v1016 = vpop.f32.mrf.mxu0
    %1017 = vdwg.mxu0
    %1018 = vmatpush.bf16.xpose.msra.mxu0 %v718
    %1019 = vmatpush.bf16.xpose.msra.mxu0 %v702
    %1020 = vmatpush.bf16.xpose.msra.mxu0 %v686
    %1021 = vmatpush.bf16.xpose.msra.mxu0 %v670
    %1022 = vmatpush.bf16.xpose.msra.mxu0 %v654
    %1023 = vmatpush.bf16.xpose.msra.mxu0 %v638
    %1024 = vmatpush.bf16.xpose.msra.mxu0 %v622
    %1025 = vmatpush.bf16.xpose.msra.mxu0 %v606
    %1026 = vmatmul.bf16.gmra.mxu0 %v74
    %v1027 = vpop.f32.mrf.mxu0
    %v1028 = vadd.f32 %v1015, %v1027
    %v1029 = vpop.f32.mrf.mxu0
    %1030 = vdwg.mxu0
    %1031 = vmatpush.bf16.xpose.msra.mxu0 %v719
    %1032 = vmatpush.bf16.xpose.msra.mxu0 %v703
    %1033 = vmatpush.bf16.xpose.msra.mxu0 %v687
    %1034 = vmatpush.bf16.xpose.msra.mxu0 %v671
    %1035 = vmatpush.bf16.xpose.msra.mxu0 %v655
    %1036 = vmatpush.bf16.xpose.msra.mxu0 %v639
    %1037 = vmatpush.bf16.xpose.msra.mxu0 %v623
    %1038 = vmatpush.bf16.xpose.msra.mxu0 %v607
    %1039 = vmatmul.bf16.gmra.mxu0 %v75
    %v1040 = vpop.f32.mrf.mxu0
    %v1041 = vadd.f32 %v1028, %v1040
    %v1042 = vpop.f32.mrf.mxu0
    %1043 = vdwg.mxu0
    %1044 = vmatpush.bf16.xpose.msra.mxu0 %v720
    %1045 = vmatpush.bf16.xpose.msra.mxu0 %v704
    %1046 = vmatpush.bf16.xpose.msra.mxu0 %v688
    %1047 = vmatpush.bf16.xpose.msra.mxu0 %v672
    %1048 = vmatpush.bf16.xpose.msra.mxu0 %v656
    %1049 = vmatpush.bf16.xpose.msra.mxu0 %v640
    %1050 = vmatpush.bf16.xpose.msra.mxu0 %v624
    %1051 = vmatpush.bf16.xpose.msra.mxu0 %v608
    %1052 = vmatmul.bf16.gmra.mxu0 %v76
    %v1053 = vpop.f32.mrf.mxu0
    %v1054 = vadd.f32 %v1041, %v1053
    %v1055 = vpop.f32.mrf.mxu0
    %1056 = vdwg.mxu0
    %1057 = vst [vmem:[#allocation7] sm:$0xff] %v1054
    // Predicated region
    $region22: #{fc_forward.1} parent=1 // pred_check
      _
    $region23: #{fc_forward.1} parent=1 // pred_check_branch
      %1059 = sbr.rel (0) target = $region25
    $region24: #{fc_forward.1} parent=1 // pred_region
      %1061 = vsyncadd [#allocation4], 0
      %s1063 = sshll.u32 [#allocation7], 4
      %s1064 = int_to_ptr.vmem [resolvable:$true] %s1063
      %s1065 = sshll.u32 %s3, 4
      %s1066 = int_to_ptr.hbm [resolvable:$true] %s1065
      %1068 = dma.vmem_to_hbm [thread:$0]  %s1064, 128, %s1066, [#allocation4]
    $region25: #{fc_forward.1} parent=1 // pred_fallthru
      _
    // Predicated region
    $region26: #{fc_forward.1} parent=1 // pred_check
      _
    $region27: #{fc_forward.1} parent=1 // pred_check_branch
      %1070 = sbr.rel (0) target = $region29
    $region28: #{fc_forward.1} parent=1 // pred_region
      %1072 = dma.done [#allocation4], 128
    $region29: #{fc_forward.1} parent=1 // pred_fallthru
      _
    %1073 = vsyncpa [#allocation3], 1
    %1074 = vsyncpa [#allocation6], 1
    %1075 = vsyncpa [#allocation4], 1

</llo_original>
